<compile_context>
chip_gen: v6e
topology: v6e:2x2x1
jax: 0.10.0
libtpu: 0.0.40
codegen_flags: <defaults>
</compile_context>

<pallas_src>
import functools

import jax
import jax.numpy as jnp
from jax.experimental import pallas as pl
from jax.experimental.pallas import tpu as pltpu

# --- module hyperparameters (from the PyTorch source) ---
HEAD_SIZE = 4
N_EMBD = 16
N_HEADS = 4


def _mha_kernel(B, T, x2_ref, xT_ref, mkeep_ref, mneg_ref, wq_ref, wkT_ref,
                wvp_ref, maskk_ref, maskv_ref, seg_ref, bp_ref, o_ref):
    H = N_HEADS

    x2 = x2_ref[...]                     # (B*T, C)  tokens on sublanes
    xT = xT_ref[...]                     # (C, B*T)  pre-transposed wrapper-side

    # Whole-batch projections: one MXU matmul each (scale folded into Wq).
    q_all = jnp.dot(x2, wq_ref[...], preferred_element_type=jnp.float32)    # (B*T, H*hs)
    kT_all = jnp.dot(wkT_ref[...], xT, preferred_element_type=jnp.float32)  # (H*hs, B*T)

    maskk = maskk_ref[...]               # (H*hs, H*T) 0/1 block-diag selector
    maskv = maskv_ref[...]               # (H*T, H*C)  0/1 block-diag selector
    wvp = wvp_ref[...]                   # (H*C, C)    per-head (Wv @ Wproj), stacked

    s_blocks = []
    v_stacks = []
    for b in range(B):
        # Block-diagonal K^T -> all-head scores in ONE matmul per batch,
        # already lane-dense for the packed softmax.
        kT_b = kT_all[:, b * T:(b + 1) * T]                               # (H*hs, T)
        kbd = jnp.concatenate([kT_b] * H, axis=1) * maskk                 # (H*hs, H*T)
        s_blocks.append(jnp.dot(q_all[b * T:(b + 1) * T, :], kbd,
                                preferred_element_type=jnp.float32))      # (T, H*T)

        # Block-diagonal X -> vertically stacked, proj-folded per-head values
        # in ONE matmul per batch.
        x_b = x2[b * T:(b + 1) * T, :]                                    # (T, C)
        x_wide = jnp.concatenate([x_b] * H, axis=1)                       # (T, H*C)
        xbd = jnp.concatenate([x_wide] * H, axis=0) * maskv               # (H*T, H*C)
        v_stacks.append(jnp.dot(xbd, wvp,
                                preferred_element_type=jnp.float32))      # (H*T, C)

    # Packed scores: (B*T, H*T) = (16, 32) -> the whole softmax fits ~1 vreg.
    s = jnp.concatenate(s_blocks, axis=0)
    # masked_fill(-1e9) semantics via precomputed packed keep / -1e9 terms.
    s = s * mkeep_ref[...] + mneg_ref[...]

    # Row max (>= every per-head segment max) is a valid softmax stabilizer.
    s = s - jnp.max(s, axis=-1, keepdims=True)
    e = jnp.exp(s)                                                         # one EUP pass
    # Per-head segment sums, broadcast back per lane, in one small MXU matmul.
    denom = jnp.dot(e, seg_ref[...], preferred_element_type=jnp.float32)   # (B*T, H*T)
    r = pl.reciprocal(denom, approx=True)
    r = r * (2.0 - denom * r)             # one Newton-Raphson step -> ~f32-exact
    p = e * r                             # (B*T, H*T)

    bias = bp_ref[...]                    # (1, C)
    for b in range(B):
        # Head-sum accumulates inside the MXU: P_b @ V_stack_b == sum_h P_h @ V_h.
        y_b = jnp.dot(p[b * T:(b + 1) * T, :], v_stacks[b],
                      preferred_element_type=jnp.float32) + bias           # (T, C)
        o_ref[b * T:(b + 1) * T, :] = y_b.astype(o_ref.dtype)


def fold_params(wq, wk, wv, wp, bp, T):
    """Static parameter folding. Call ONCE (outside the per-call hot path)."""
    H, hs, C = N_HEADS, HEAD_SIZE, N_EMBD
    scale = 1.0 / (hs ** 0.5)
    # Q projection with attention scale folded in; K projection pre-transposed.
    w_q = jnp.transpose(wq, (1, 0, 2)).reshape(C, H * hs) * scale           # (C, H*hs)
    w_kT = jnp.transpose(wk, (0, 2, 1)).reshape(H * hs, C)                  # (H*hs, C)
    # Fold the output projection into the per-head V weights, stacked vertically:
    #   y_b = sum_h softmax_h @ (x_b @ Wv_h @ Wp_h) + b
    wvp = jnp.einsum('hcd,hdk->hck', wv, wp.reshape(H, hs, C))              # (H, C, C)
    wvp_stack = wvp.reshape(H * C, C)                                       # (H*C, C)

    head_of = lambda n: jnp.repeat(jnp.arange(H), n)
    maskk = (head_of(hs)[:, None] == head_of(T)[None, :]).astype(jnp.float32)  # (H*hs, H*T)
    maskv = (head_of(T)[:, None] == head_of(C)[None, :]).astype(jnp.float32)   # (H*T, H*C)
    seg = (head_of(T)[:, None] == head_of(T)[None, :]).astype(jnp.float32)     # (H*T, H*T)
    bp2 = bp.reshape(1, C)
    return dict(w_q=w_q, w_kT=w_kT, wvp_stack=wvp_stack,
                maskk=maskk, maskv=maskv, seg=seg, bp2=bp2)


@jax.jit
def multihead_attention(x, mask, params):
    """x: (B, T, C) f32, mask: (B, T) f32 (1=keep, 0=mask), params from fold_params."""
    B, T, C = x.shape
    H = N_HEADS
    HD = H * HEAD_SIZE
    HT = H * T

    x2 = x.reshape(B * T, C)
    xT = x2.T                                             # (C, B*T)

    # Packed mask terms (same (B*T, H*T) layout as the scores):
    #   s_masked = s * keep + (1 - keep) * (-1e9)   == torch masked_fill semantics.
    keep = ((mask[:, :, None] * mask[:, None, :]) != 0).astype(x.dtype)     # (B, T, T)
    mkeep = jnp.broadcast_to(keep[:, :, None, :], (B, T, H, T)).reshape(B * T, HT)
    mneg = (1.0 - mkeep) * jnp.float32(-1e9)

    kernel = functools.partial(_mha_kernel, B, T)
    out = pl.pallas_call(
        kernel,
        out_shape=jax.ShapeDtypeStruct((B * T, C), x.dtype),
        grid_spec=pltpu.PrefetchScalarGridSpec(
            num_scalar_prefetch=0,
            grid=(1,),                                   # whole problem in one step
            in_specs=[
                pl.BlockSpec((B * T, C), lambda i: (0, 0)),     # x2
                pl.BlockSpec((C, B * T), lambda i: (0, 0)),     # xT
                pl.BlockSpec((B * T, HT), lambda i: (0, 0)),    # mkeep
                pl.BlockSpec((B * T, HT), lambda i: (0, 0)),    # mneg
                pl.BlockSpec((C, HD), lambda i: (0, 0)),        # w_q (scaled)
                pl.BlockSpec((HD, C), lambda i: (0, 0)),        # w_k^T
                pl.BlockSpec((H * C, C), lambda i: (0, 0)),     # stacked Wv@Wproj
                pl.BlockSpec((HD, HT), lambda i: (0, 0)),       # K block-diag mask
                pl.BlockSpec((HT, H * C), lambda i: (0, 0)),    # V block-diag mask
                pl.BlockSpec((HT, HT), lambda i: (0, 0)),       # segment-sum matrix
                pl.BlockSpec((1, C), lambda i: (0, 0)),         # proj bias
            ],
            out_specs=pl.BlockSpec((B * T, C), lambda i: (0, 0)),
        ),
        compiler_params=pltpu.CompilerParams(
            # Latency-bound at this size; a parallel grid axis would only help
            # on v7x (2 TCs) if the effective batch grows.
            dimension_semantics=("arbitrary",),
        ),
    )(x2, xT, mkeep, mneg,
      params['w_q'], params['w_kT'], params['wvp_stack'],
      params['maskk'], params['maskv'], params['seg'], params['bp2'])
    return out.reshape(B, T, C)


def multihead_reference(x, mask, wq, wk, wv, wp, bp):
    """Pure-JAX reference mirroring the PyTorch forward (eval mode)."""
    scale = 1.0 / (HEAD_SIZE ** 0.5)
    hp = jax.lax.Precision.HIGHEST
    mc = mask[:, :, None] * mask[:, None, :]          # (B, T, T)
    outs = []
    for h in range(N_HEADS):
        q = jnp.einsum('btc,cd->btd', x, wq[h], precision=hp)
        k = jnp.einsum('btc,cd->btd', x, wk[h], precision=hp)
        v = jnp.einsum('btc,cd->btd', x, wv[h], precision=hp)
        wei = jnp.einsum('btd,bsd->bts', q, k, precision=hp) * scale
        wei = jnp.where(mc == 0, -1e9, wei)
        wei = jax.nn.softmax(wei, axis=-1)
        outs.append(jnp.einsum('bts,bsd->btd', wei, v, precision=hp))
    cat = jnp.concatenate(outs, axis=-1)
    return jnp.einsum('btd,dc->btc', cat, wp, precision=hp) + bp


if __name__ == "__main__":
    B, T, C = 2, 8, N_EMBD
    HD = N_HEADS * HEAD_SIZE

    key = jax.random.PRNGKey(0)
    kx, kq, kk, kv, kp, kb = jax.random.split(key, 6)

    x = jax.random.normal(kx, (B, T, C), dtype=jnp.float32)

    # Deterministic synthetic parameters (per-head q/k/v weights, proj weight + bias).
    wq = jax.random.normal(kq, (N_HEADS, N_EMBD, HEAD_SIZE), dtype=jnp.float32) * 0.1
    wk = jax.random.normal(kk, (N_HEADS, N_EMBD, HEAD_SIZE), dtype=jnp.float32) * 0.1
    wv = jax.random.normal(kv, (N_HEADS, N_EMBD, HEAD_SIZE), dtype=jnp.float32) * 0.1
    wp = jax.random.normal(kp, (HD, N_EMBD), dtype=jnp.float32) * 0.1
    bp = jax.random.normal(kb, (N_EMBD,), dtype=jnp.float32) * 0.1

    # Padding-style mask: batch 0 fully valid, batch 1 valid for first 5 tokens.
    mask = jnp.stack([
        jnp.ones((T,), dtype=jnp.float32),
        (jnp.arange(T) < 5).astype(jnp.float32),
    ])

    # Static folding done ONCE, outside the per-call path.
    params = fold_params(wq, wk, wv, wp, bp, T)

    out = multihead_attention(x, mask, params)
    out = jax.block_until_ready(out)

    ref = multihead_reference(x, mask, wq, wk, wv, wp, bp)
    assert out.shape == (B, T, C)
    # Newton-Raphson-refined reciprocal + exact scale fold -> tight tolerance again.
    assert jnp.allclose(out, ref, atol=1e-4, rtol=1e-4), "mismatch vs reference"

    print("KERNEL_OK")
</pallas_src>

<mosaic_0001>
module attributes {stable_mosaic.version = 11 : i64} {
  func.func @_mha_kernel(%arg0: i32, %arg1: memref<16x16xf32, #tpu.memory_space<vmem>>, %arg2: memref<16x16xf32, #tpu.memory_space<vmem>>, %arg3: memref<16x32xf32, #tpu.memory_space<vmem>>, %arg4: memref<16x32xf32, #tpu.memory_space<vmem>>, %arg5: memref<16x16xf32, #tpu.memory_space<vmem>>, %arg6: memref<16x16xf32, #tpu.memory_space<vmem>>, %arg7: memref<64x16xf32, #tpu.memory_space<vmem>>, %arg8: memref<16x32xf32, #tpu.memory_space<vmem>>, %arg9: memref<32x64xf32, #tpu.memory_space<vmem>>, %arg10: memref<32x32xf32, #tpu.memory_space<vmem>>, %arg11: memref<1x16xf32, #tpu.memory_space<vmem>>, %arg12: memref<16x16xf32, #tpu.memory_space<vmem>>) attributes {dimension_semantics = [#tpu.dimension_semantics<arbitrary>], iteration_bounds = array<i64: 1>, scalar_prefetch = 0 : i64, scratch_operands = 0 : i64, tpu.core_type = #tpu.core_type<tc>, window_params = [{pipeline_mode = #tpu.pipeline_mode<synchronous>, transform_indices = @transform_0, window_bounds = array<i64: 16, 16>}, {pipeline_mode = #tpu.pipeline_mode<synchronous>, transform_indices = @transform_1, window_bounds = array<i64: 16, 16>}, {pipeline_mode = #tpu.pipeline_mode<synchronous>, transform_indices = @transform_2, window_bounds = array<i64: 16, 32>}, {pipeline_mode = #tpu.pipeline_mode<synchronous>, transform_indices = @transform_3, window_bounds = array<i64: 16, 32>}, {pipeline_mode = #tpu.pipeline_mode<synchronous>, transform_indices = @transform_4, window_bounds = array<i64: 16, 16>}, {pipeline_mode = #tpu.pipeline_mode<synchronous>, transform_indices = @transform_5, window_bounds = array<i64: 16, 16>}, {pipeline_mode = #tpu.pipeline_mode<synchronous>, transform_indices = @transform_6, window_bounds = array<i64: 64, 16>}, {pipeline_mode = #tpu.pipeline_mode<synchronous>, transform_indices = @transform_7, window_bounds = array<i64: 16, 32>}, {pipeline_mode = #tpu.pipeline_mode<synchronous>, transform_indices = @transform_8, window_bounds = array<i64: 32, 64>}, {pipeline_mode = #tpu.pipeline_mode<synchronous>, transform_indices = @transform_9, window_bounds = array<i64: 32, 32>}, {pipeline_mode = #tpu.pipeline_mode<synchronous>, transform_indices = @transform_10, window_bounds = array<i64: 1, 16>}, {pipeline_mode = #tpu.pipeline_mode<synchronous>, transform_indices = @transform_11, window_bounds = array<i64: 16, 16>}]} {
    %c0 = arith.constant 0 : index
    %c0_0 = arith.constant 0 : index
    %0 = vector.load %arg1[%c0, %c0_0] : memref<16x16xf32, #tpu.memory_space<vmem>>, vector<16x16xf32>
    %c0_1 = arith.constant 0 : index
    %c0_2 = arith.constant 0 : index
    %1 = vector.load %arg2[%c0_1, %c0_2] : memref<16x16xf32, #tpu.memory_space<vmem>>, vector<16x16xf32>
    %c0_3 = arith.constant 0 : index
    %c0_4 = arith.constant 0 : index
    %2 = vector.load %arg5[%c0_3, %c0_4] : memref<16x16xf32, #tpu.memory_space<vmem>>, vector<16x16xf32>
    %cst = arith.constant dense<0.000000e+00> : vector<16x16xf32>
    %3 = tpu.matmul %0, %2, %cst {dimension_numbers = #tpu.dot_dimension_numbers<[1], [0], [0], [1], [0, 0, 1, 1], [], []>} : vector<16x16xf32>, vector<16x16xf32>, vector<16x16xf32> -> vector<16x16xf32>
    %c0_5 = arith.constant 0 : index
    %c0_6 = arith.constant 0 : index
    %4 = vector.load %arg6[%c0_5, %c0_6] : memref<16x16xf32, #tpu.memory_space<vmem>>, vector<16x16xf32>
    %cst_7 = arith.constant dense<0.000000e+00> : vector<16x16xf32>
    %5 = tpu.matmul %4, %1, %cst_7 {dimension_numbers = #tpu.dot_dimension_numbers<[1], [0], [0], [1], [0, 0, 1, 1], [], []>} : vector<16x16xf32>, vector<16x16xf32>, vector<16x16xf32> -> vector<16x16xf32>
    %c0_8 = arith.constant 0 : index
    %c0_9 = arith.constant 0 : index
    %6 = vector.load %arg8[%c0_8, %c0_9] : memref<16x32xf32, #tpu.memory_space<vmem>>, vector<16x32xf32>
    %c0_10 = arith.constant 0 : index
    %c0_11 = arith.constant 0 : index
    %7 = vector.load %arg9[%c0_10, %c0_11] : memref<32x64xf32, #tpu.memory_space<vmem>>, vector<32x64xf32>
    %c0_12 = arith.constant 0 : index
    %c0_13 = arith.constant 0 : index
    %8 = vector.load %arg7[%c0_12, %c0_13] : memref<64x16xf32, #tpu.memory_space<vmem>>, vector<64x16xf32>
    %9 = vector.extract_strided_slice %5 {offsets = [0, 0], sizes = [16, 8], strides = [1, 1]} : vector<16x16xf32> to vector<16x8xf32>
    %10 = tpu.concatenate %9, %9, %9, %9 in 1 : vector<16x8xf32>, vector<16x8xf32>, vector<16x8xf32>, vector<16x8xf32> -> vector<16x32xf32>
    %11 = arith.mulf %10, %6 : vector<16x32xf32>
    %12 = vector.extract_strided_slice %3 {offsets = [0, 0], sizes = [8, 16], strides = [1, 1]} : vector<16x16xf32> to vector<8x16xf32>
    %cst_14 = arith.constant dense<0.000000e+00> : vector<8x32xf32>
    %13 = tpu.matmul %12, %11, %cst_14 {dimension_numbers = #tpu.dot_dimension_numbers<[1], [0], [0], [1], [0, 0, 1, 1], [], []>} : vector<8x16xf32>, vector<16x32xf32>, vector<8x32xf32> -> vector<8x32xf32>
    %14 = vector.extract_strided_slice %0 {offsets = [0, 0], sizes = [8, 16], strides = [1, 1]} : vector<16x16xf32> to vector<8x16xf32>
    %15 = tpu.concatenate %14, %14, %14, %14 in 1 : vector<8x16xf32>, vector<8x16xf32>, vector<8x16xf32>, vector<8x16xf32> -> vector<8x64xf32>
    %16 = tpu.concatenate %15, %15, %15, %15 in 0 : vector<8x64xf32>, vector<8x64xf32>, vector<8x64xf32>, vector<8x64xf32> -> vector<32x64xf32>
    %17 = arith.mulf %16, %7 : vector<32x64xf32>
    %cst_15 = arith.constant dense<0.000000e+00> : vector<32x16xf32>
    %18 = tpu.matmul %17, %8, %cst_15 {dimension_numbers = #tpu.dot_dimension_numbers<[1], [0], [0], [1], [0, 0, 1, 1], [], []>} : vector<32x64xf32>, vector<64x16xf32>, vector<32x16xf32> -> vector<32x16xf32>
    %19 = vector.extract_strided_slice %5 {offsets = [0, 8], sizes = [16, 8], strides = [1, 1]} : vector<16x16xf32> to vector<16x8xf32>
    %20 = tpu.concatenate %19, %19, %19, %19 in 1 : vector<16x8xf32>, vector<16x8xf32>, vector<16x8xf32>, vector<16x8xf32> -> vector<16x32xf32>
    %21 = arith.mulf %20, %6 : vector<16x32xf32>
    %22 = vector.extract_strided_slice %3 {offsets = [8, 0], sizes = [8, 16], strides = [1, 1]} : vector<16x16xf32> to vector<8x16xf32>
    %cst_16 = arith.constant dense<0.000000e+00> : vector<8x32xf32>
    %23 = tpu.matmul %22, %21, %cst_16 {dimension_numbers = #tpu.dot_dimension_numbers<[1], [0], [0], [1], [0, 0, 1, 1], [], []>} : vector<8x16xf32>, vector<16x32xf32>, vector<8x32xf32> -> vector<8x32xf32>
    %24 = vector.extract_strided_slice %0 {offsets = [8, 0], sizes = [8, 16], strides = [1, 1]} : vector<16x16xf32> to vector<8x16xf32>
    %25 = tpu.concatenate %24, %24, %24, %24 in 1 : vector<8x16xf32>, vector<8x16xf32>, vector<8x16xf32>, vector<8x16xf32> -> vector<8x64xf32>
    %26 = tpu.concatenate %25, %25, %25, %25 in 0 : vector<8x64xf32>, vector<8x64xf32>, vector<8x64xf32>, vector<8x64xf32> -> vector<32x64xf32>
    %27 = arith.mulf %26, %7 : vector<32x64xf32>
    %cst_17 = arith.constant dense<0.000000e+00> : vector<32x16xf32>
    %28 = tpu.matmul %27, %8, %cst_17 {dimension_numbers = #tpu.dot_dimension_numbers<[1], [0], [0], [1], [0, 0, 1, 1], [], []>} : vector<32x64xf32>, vector<64x16xf32>, vector<32x16xf32> -> vector<32x16xf32>
    %29 = tpu.concatenate %13, %23 in 0 : vector<8x32xf32>, vector<8x32xf32> -> vector<16x32xf32>
    %c0_18 = arith.constant 0 : index
    %c0_19 = arith.constant 0 : index
    %30 = vector.load %arg3[%c0_18, %c0_19] : memref<16x32xf32, #tpu.memory_space<vmem>>, vector<16x32xf32>
    %31 = arith.mulf %29, %30 : vector<16x32xf32>
    %c0_20 = arith.constant 0 : index
    %c0_21 = arith.constant 0 : index
    %32 = vector.load %arg4[%c0_20, %c0_21] : memref<16x32xf32, #tpu.memory_space<vmem>>, vector<16x32xf32>
    %33 = arith.addf %31, %32 : vector<16x32xf32>
    %cst_22 = arith.constant dense<0xFF800000> : vector<16xf32>
    %34 = vector.multi_reduction <maximumf>, %33, %cst_22 [1] : vector<16x32xf32> to vector<16xf32>
    %35 = vector.shape_cast %34 : vector<16xf32> to vector<16x1xf32>
    %36 = vector.broadcast %35 : vector<16x1xf32> to vector<16x32xf32>
    %37 = arith.subf %33, %36 : vector<16x32xf32>
    %38 = math.exp %37 : vector<16x32xf32>
    %c0_23 = arith.constant 0 : index
    %c0_24 = arith.constant 0 : index
    %39 = vector.load %arg10[%c0_23, %c0_24] : memref<32x32xf32, #tpu.memory_space<vmem>>, vector<32x32xf32>
    %cst_25 = arith.constant dense<0.000000e+00> : vector<16x32xf32>
    %40 = tpu.matmul %38, %39, %cst_25 {dimension_numbers = #tpu.dot_dimension_numbers<[1], [0], [0], [1], [0, 0, 1, 1], [], []>} : vector<16x32xf32>, vector<32x32xf32>, vector<16x32xf32> -> vector<16x32xf32>
    %41 = tpu.reciprocal %40 {approx = true} : vector<16x32xf32> -> vector<16x32xf32>
    %42 = arith.mulf %40, %41 : vector<16x32xf32>
    %cst_26 = arith.constant 2.000000e+00 : f32
    %43 = vector.broadcast %cst_26 : f32 to vector<16x32xf32>
    %44 = arith.subf %43, %42 : vector<16x32xf32>
    %45 = arith.mulf %41, %44 : vector<16x32xf32>
    %46 = arith.mulf %38, %45 : vector<16x32xf32>
    %c0_27 = arith.constant 0 : index
    %c0_28 = arith.constant 0 : index
    %47 = vector.load %arg11[%c0_27, %c0_28] : memref<1x16xf32, #tpu.memory_space<vmem>>, vector<1x16xf32>
    %48 = vector.extract_strided_slice %46 {offsets = [0, 0], sizes = [8, 32], strides = [1, 1]} : vector<16x32xf32> to vector<8x32xf32>
    %cst_29 = arith.constant dense<0.000000e+00> : vector<8x16xf32>
    %49 = tpu.matmul %48, %18, %cst_29 {dimension_numbers = #tpu.dot_dimension_numbers<[1], [0], [0], [1], [0, 0, 1, 1], [], []>} : vector<8x32xf32>, vector<32x16xf32>, vector<8x16xf32> -> vector<8x16xf32>
    %50 = vector.broadcast %47 : vector<1x16xf32> to vector<8x16xf32>
    %51 = arith.addf %49, %50 : vector<8x16xf32>
    %c0_30 = arith.constant 0 : index
    %c0_31 = arith.constant 0 : index
    %52 = vector.load %arg12[%c0_30, %c0_31] : memref<16x16xf32, #tpu.memory_space<vmem>>, vector<8x16xf32>
    tpu.vector_store %arg12[%c0_30, %c0_31], %51 {strides = array<i32>} : memref<16x16xf32, #tpu.memory_space<vmem>>, vector<8x16xf32>,
    %53 = vector.extract_strided_slice %46 {offsets = [8, 0], sizes = [8, 32], strides = [1, 1]} : vector<16x32xf32> to vector<8x32xf32>
    %cst_32 = arith.constant dense<0.000000e+00> : vector<8x16xf32>
    %54 = tpu.matmul %53, %28, %cst_32 {dimension_numbers = #tpu.dot_dimension_numbers<[1], [0], [0], [1], [0, 0, 1, 1], [], []>} : vector<8x32xf32>, vector<32x16xf32>, vector<8x16xf32> -> vector<8x16xf32>
    %55 = vector.broadcast %47 : vector<1x16xf32> to vector<8x16xf32>
    %56 = arith.addf %54, %55 : vector<8x16xf32>
    %c8 = arith.constant 8 : index
    %c0_33 = arith.constant 0 : index
    %57 = vector.load %arg12[%c8, %c0_33] : memref<16x16xf32, #tpu.memory_space<vmem>>, vector<8x16xf32>
    tpu.vector_store %arg12[%c8, %c0_33], %56 {strides = array<i32>} : memref<16x16xf32, #tpu.memory_space<vmem>>, vector<8x16xf32>,
    return
  }
  func.func @transform_0(%arg0: i32) -> (i32, i32) {
    %c0_i32 = arith.constant 0 : i32
    %c0_i32_0 = arith.constant 0 : i32
    %c0_i32_1 = arith.constant 0 : i32
    return %c0_i32, %c0_i32_0 : i32, i32
  }
  func.func @transform_1(%arg0: i32) -> (i32, i32) {
    %c0_i32 = arith.constant 0 : i32
    %c0_i32_0 = arith.constant 0 : i32
    %c0_i32_1 = arith.constant 0 : i32
    return %c0_i32, %c0_i32_0 : i32, i32
  }
  func.func @transform_2(%arg0: i32) -> (i32, i32) {
    %c0_i32 = arith.constant 0 : i32
    %c0_i32_0 = arith.constant 0 : i32
    %c0_i32_1 = arith.constant 0 : i32
    return %c0_i32, %c0_i32_0 : i32, i32
  }
  func.func @transform_3(%arg0: i32) -> (i32, i32) {
    %c0_i32 = arith.constant 0 : i32
    %c0_i32_0 = arith.constant 0 : i32
    %c0_i32_1 = arith.constant 0 : i32
    return %c0_i32, %c0_i32_0 : i32, i32
  }
  func.func @transform_4(%arg0: i32) -> (i32, i32) {
    %c0_i32 = arith.constant 0 : i32
    %c0_i32_0 = arith.constant 0 : i32
    %c0_i32_1 = arith.constant 0 : i32
    return %c0_i32, %c0_i32_0 : i32, i32
  }
  func.func @transform_5(%arg0: i32) -> (i32, i32) {
    %c0_i32 = arith.constant 0 : i32
    %c0_i32_0 = arith.constant 0 : i32
    %c0_i32_1 = arith.constant 0 : i32
    return %c0_i32, %c0_i32_0 : i32, i32
  }
  func.func @transform_6(%arg0: i32) -> (i32, i32) {
    %c0_i32 = arith.constant 0 : i32
    %c0_i32_0 = arith.constant 0 : i32
    %c0_i32_1 = arith.constant 0 : i32
    return %c0_i32, %c0_i32_0 : i32, i32
  }
  func.func @transform_7(%arg0: i32) -> (i32, i32) {
    %c0_i32 = arith.constant 0 : i32
    %c0_i32_0 = arith.constant 0 : i32
    %c0_i32_1 = arith.constant 0 : i32
    return %c0_i32, %c0_i32_0 : i32, i32
  }
  func.func @transform_8(%arg0: i32) -> (i32, i32) {
    %c0_i32 = arith.constant 0 : i32
    %c0_i32_0 = arith.constant 0 : i32
    %c0_i32_1 = arith.constant 0 : i32
    return %c0_i32, %c0_i32_0 : i32, i32
  }
  func.func @transform_9(%arg0: i32) -> (i32, i32) {
    %c0_i32 = arith.constant 0 : i32
    %c0_i32_0 = arith.constant 0 : i32
    %c0_i32_1 = arith.constant 0 : i32
    return %c0_i32, %c0_i32_0 : i32, i32
  }
  func.func @transform_10(%arg0: i32) -> (i32, i32) {
    %c0_i32 = arith.constant 0 : i32
    %c0_i32_0 = arith.constant 0 : i32
    %c0_i32_1 = arith.constant 0 : i32
    return %c0_i32, %c0_i32_0 : i32, i32
  }
  func.func @transform_11(%arg0: i32) -> (i32, i32) {
    %c0_i32 = arith.constant 0 : i32
    %c0_i32_0 = arith.constant 0 : i32
    %c0_i32_1 = arith.constant 0 : i32
    return %c0_i32, %c0_i32_0 : i32, i32
  }
}

</mosaic_0001>

<llo_original>
// kernel: multihead_attention.1
$region0: #{multihead_attention.1}
  #allocation0 [shape = 'u32[]', space=smem, size = 0x4, offset = 0x4, fixed_abs, tag = 'smem constant byte address 0x4 - core index']
  #allocation1 [shape = 'u32[144,128]{1,0:T(1,128)}', space=vmem, size = 0x12000, scoped, tag = 'internal scratch']
  %s0 = inlined_call_operand.vmem [shape: f32[16,16], index: 0, kind: input, shape index: {}]
  %s1 = inlined_call_operand.vmem [shape: f32[16,16], index: 1, kind: input, shape index: {}]
  %s2 = inlined_call_operand.vmem [shape: f32[16,32], index: 2, kind: input, shape index: {}]
  %s3 = inlined_call_operand.vmem [shape: f32[16,32], index: 3, kind: input, shape index: {}]
  %s4 = inlined_call_operand.vmem [shape: f32[16,16], index: 4, kind: input, shape index: {}]
  %s5 = inlined_call_operand.vmem [shape: f32[16,16], index: 5, kind: input, shape index: {}]
  %s6 = inlined_call_operand.vmem [shape: f32[64,16], index: 6, kind: input, shape index: {}]
  %s7 = inlined_call_operand.vmem [shape: f32[16,32], index: 7, kind: input, shape index: {}]
  %s8 = inlined_call_operand.vmem [shape: f32[32,64], index: 8, kind: input, shape index: {}]
  %s9 = inlined_call_operand.vmem [shape: f32[32,32], index: 9, kind: input, shape index: {}]
  %s10 = inlined_call_operand.vmem [shape: f32[1,16], index: 10, kind: input, shape index: {}]
  %s11 = inlined_call_operand.hbm [shape: f32[16,16], index: 11, kind: output, shape index: {}]
  %s12 = sld [smem:[#allocation0]]
  $region54: #{multihead_attention.1} parent=0
    _
  %s14 = ssub.s32 1, %s12
  %s15 = scalar_select 0, %s14, %s12
  $region1: #{multihead_attention.1} parent=0
    #allocation2 [shape = 'u8[8192]{0}', space=vmem, size = 0x2000, scoped, tag = 'output window, operand 0, single buffered']
    #allocation3 [shape = 's32[1]{0}', space=sflag, size = 0x4, scoped, tag = 'scoped memory for multihead_attention.1']
    %16 = vsyncpa [#allocation3], 0
    // Predicated region
    $region2: #{multihead_attention.1} parent=1 // pred_check
      _
    $region3: #{multihead_attention.1} parent=1 // pred_check_branch
      %18 = sbr.rel (0) target = $region5
    $region4: #{multihead_attention.1} parent=1 // pred_region
      _
    $region5: #{multihead_attention.1} parent=1 // pred_fallthru
      _
    // Predicated region
    $region6: #{multihead_attention.1} parent=1 // pred_check
      _
    $region7: #{multihead_attention.1} parent=1 // pred_check_branch
      %20 = sbr.rel (0) target = $region9
    $region8: #{multihead_attention.1} parent=1 // pred_region
      _
    $region9: #{multihead_attention.1} parent=1 // pred_fallthru
      _
    // Predicated region
    $region10: #{multihead_attention.1} parent=1 // pred_check
      _
    $region11: #{multihead_attention.1} parent=1 // pred_check_branch
      %22 = sbr.rel (0) target = $region13
    $region12: #{multihead_attention.1} parent=1 // pred_region
      _
    $region13: #{multihead_attention.1} parent=1 // pred_fallthru
      _
    // Predicated region
    $region14: #{multihead_attention.1} parent=1 // pred_check
      _
    $region15: #{multihead_attention.1} parent=1 // pred_check_branch
      %24 = sbr.rel (0) target = $region17
    $region16: #{multihead_attention.1} parent=1 // pred_region
      _
    $region17: #{multihead_attention.1} parent=1 // pred_fallthru
      _
    // Predicated region
    $region18: #{multihead_attention.1} parent=1 // pred_check
      _
    $region19: #{multihead_attention.1} parent=1 // pred_check_branch
      %26 = sbr.rel (0) target = $region21
    $region20: #{multihead_attention.1} parent=1 // pred_region
      _
    $region21: #{multihead_attention.1} parent=1 // pred_fallthru
      _
    // Predicated region
    $region22: #{multihead_attention.1} parent=1 // pred_check
      _
    $region23: #{multihead_attention.1} parent=1 // pred_check_branch
      %28 = sbr.rel (0) target = $region25
    $region24: #{multihead_attention.1} parent=1 // pred_region
      _
    $region25: #{multihead_attention.1} parent=1 // pred_fallthru
      _
    // Predicated region
    $region26: #{multihead_attention.1} parent=1 // pred_check
      _
    $region27: #{multihead_attention.1} parent=1 // pred_check_branch
      %30 = sbr.rel (0) target = $region29
    $region28: #{multihead_attention.1} parent=1 // pred_region
      _
    $region29: #{multihead_attention.1} parent=1 // pred_fallthru
      _
    // Predicated region
    $region30: #{multihead_attention.1} parent=1 // pred_check
      _
    $region31: #{multihead_attention.1} parent=1 // pred_check_branch
      %32 = sbr.rel (0) target = $region33
    $region32: #{multihead_attention.1} parent=1 // pred_region
      _
    $region33: #{multihead_attention.1} parent=1 // pred_fallthru
      _
    // Predicated region
    $region34: #{multihead_attention.1} parent=1 // pred_check
      _
    $region35: #{multihead_attention.1} parent=1 // pred_check_branch
      %34 = sbr.rel (0) target = $region37
    $region36: #{multihead_attention.1} parent=1 // pred_region
      _
    $region37: #{multihead_attention.1} parent=1 // pred_fallthru
      _
    // Predicated region
    $region38: #{multihead_attention.1} parent=1 // pred_check
      _
    $region39: #{multihead_attention.1} parent=1 // pred_check_branch
      %36 = sbr.rel (0) target = $region41
    $region40: #{multihead_attention.1} parent=1 // pred_region
      _
    $region41: #{multihead_attention.1} parent=1 // pred_fallthru
      _
    // Predicated region
    $region42: #{multihead_attention.1} parent=1 // pred_check
      _
    $region43: #{multihead_attention.1} parent=1 // pred_check_branch
      %38 = sbr.rel (0) target = $region45
    $region44: #{multihead_attention.1} parent=1 // pred_region
      _
    $region45: #{multihead_attention.1} parent=1 // pred_fallthru
      _
    %v39 = vld [vmem:[%s0] sm:$0xff]
    %v40 = vld [vmem:[%s0 + $0x8] sm:$0xff]
    %v41 = vld [vmem:[%s1] sm:$0xff]
    %v42 = vld [vmem:[%s1 + $0x8] sm:$0xff]
    %v43 = vld [vmem:[%s4] sm:$0xff]
    %v44 = vld [vmem:[%s4 + $0x8] sm:$0xff]
    %vm45 = vcmask 130048
    %v47 = vsel %vm45, %v39, 0
    %v50 = vsel %vm45, %v40, 0
    %52 = vmatprep.subr.mxu0 0.0
    %53 = vmatpush1.msra.mxu0 0.0
    %54 = vmatprep.subr.mxu0 0.0
    %55 = vmatpush1.msra.mxu0 0.0
    %56 = vmatprep.subr.mxu0 0.0
    %57 = vmatpush1.msra.mxu0 0.0
    %58 = vmatprep.subr.mxu0 0.0
    %59 = vmatpush1.msra.mxu0 0.0
    %60 = vmatprep.subr.mxu0 0.0
    %61 = vmatpush1.msra.mxu0 0.0
    %62 = vmatprep.subr.mxu0 0.0
    %63 = vmatpush1.msra.mxu0 0.0
    %64 = vmatprep.subr.mxu0 0.0
    %65 = vmatpush1.msra.mxu0 0.0
    %66 = vmatprep.subr.mxu0 0.0
    %67 = vmatpush1.msra.mxu0 0.0
    %68 = vmatprep.subr.mxu0 0.0
    %69 = vmatpush1.msra.mxu0 0.0
    %70 = vmatprep.subr.mxu0 0.0
    %71 = vmatpush1.msra.mxu0 0.0
    %72 = vmatprep.subr.mxu0 0.0
    %73 = vmatpush1.msra.mxu0 0.0
    %74 = vmatprep.subr.mxu0 0.0
    %75 = vmatpush1.msra.mxu0 0.0
    %76 = vmatprep.subr.mxu0 0.0
    %77 = vmatpush1.msra.mxu0 0.0
    %78 = vmatprep.subr.mxu0 0.0
    %79 = vmatpush1.msra.mxu0 0.0
    %80 = vmatprep.subr.mxu0 0.0
    %81 = vmatpush1.msra.mxu0 %v44
    %82 = vmatprep.subr.mxu0 0.0
    %83 = vmatpush1.msra.mxu0 %v43
    %84 = vmatprep.subr.mxu0 0.0
    %85 = vmatpush2.msra.mxu0 0.0
    %86 = vmatprep.subr.mxu0 0.0
    %87 = vmatpush2.msra.mxu0 0.0
    %88 = vmatprep.subr.mxu0 0.0
    %89 = vmatpush2.msra.mxu0 0.0
    %90 = vmatprep.subr.mxu0 0.0
    %91 = vmatpush2.msra.mxu0 0.0
    %92 = vmatprep.subr.mxu0 0.0
    %93 = vmatpush2.msra.mxu0 0.0
    %94 = vmatprep.subr.mxu0 0.0
    %95 = vmatpush2.msra.mxu0 0.0
    %96 = vmatprep.subr.mxu0 0.0
    %97 = vmatpush2.msra.mxu0 0.0
    %98 = vmatprep.subr.mxu0 0.0
    %99 = vmatpush2.msra.mxu0 0.0
    %100 = vmatprep.subr.mxu0 0.0
    %101 = vmatpush2.msra.mxu0 0.0
    %102 = vmatprep.subr.mxu0 0.0
    %103 = vmatpush2.msra.mxu0 0.0
    %104 = vmatprep.subr.mxu0 0.0
    %105 = vmatpush2.msra.mxu0 0.0
    %106 = vmatprep.subr.mxu0 0.0
    %107 = vmatpush2.msra.mxu0 0.0
    %108 = vmatprep.subr.mxu0 0.0
    %109 = vmatpush2.msra.mxu0 0.0
    %110 = vmatprep.subr.mxu0 0.0
    %111 = vmatpush2.msra.mxu0 0.0
    %112 = vmatprep.subr.mxu0 0.0
    %113 = vmatpush2.msra.mxu0 0.0
    %114 = vmatprep.subr.mxu0 0.0
    %115 = vmatpush2.msra.mxu0 0.0
    %116 = vmatprep.mubr.f32.mxu0 0.0
    %117 = vmatmul.mubr.f32.gmra.mxu0 %v47
    %v118 = vpop.f32.mrf.mxu0
    %v119 = vadd.f32 0.0, %v118
    %v120 = vpop.f32.mrf.mxu0
    %121 = vmatprep.mubr.f32.mxu0 0.0
    %122 = vmatmul.mubr.f32.gmra.mxu0 %v50
    %v123 = vpop.f32.mrf.mxu0
    %v124 = vadd.f32 0.0, %v123
    %v125 = vpop.f32.mrf.mxu0
    %126 = vdwg.mxu0
    %v127 = vld [vmem:[%s5] sm:$0xff]
    %v128 = vld [vmem:[%s5 + $0x8] sm:$0xff]
    %v130 = vsel %vm45, %v127, 0
    %v133 = vsel %vm45, %v128, 0
    %135 = vmatprep.subr.mxu0 0.0
    %136 = vmatpush1.msra.mxu0 0.0
    %137 = vmatprep.subr.mxu0 0.0
    %138 = vmatpush1.msra.mxu0 0.0
    %139 = vmatprep.subr.mxu0 0.0
    %140 = vmatpush1.msra.mxu0 0.0
    %141 = vmatprep.subr.mxu0 0.0
    %142 = vmatpush1.msra.mxu0 0.0
    %143 = vmatprep.subr.mxu0 0.0
    %144 = vmatpush1.msra.mxu0 0.0
    %145 = vmatprep.subr.mxu0 0.0
    %146 = vmatpush1.msra.mxu0 0.0
    %147 = vmatprep.subr.mxu0 0.0
    %148 = vmatpush1.msra.mxu0 0.0
    %149 = vmatprep.subr.mxu0 0.0
    %150 = vmatpush1.msra.mxu0 0.0
    %151 = vmatprep.subr.mxu0 0.0
    %152 = vmatpush1.msra.mxu0 0.0
    %153 = vmatprep.subr.mxu0 0.0
    %154 = vmatpush1.msra.mxu0 0.0
    %155 = vmatprep.subr.mxu0 0.0
    %156 = vmatpush1.msra.mxu0 0.0
    %157 = vmatprep.subr.mxu0 0.0
    %158 = vmatpush1.msra.mxu0 0.0
    %159 = vmatprep.subr.mxu0 0.0
    %160 = vmatpush1.msra.mxu0 0.0
    %161 = vmatprep.subr.mxu0 0.0
    %162 = vmatpush1.msra.mxu0 0.0
    %163 = vmatprep.subr.mxu0 0.0
    %164 = vmatpush1.msra.mxu0 %v42
    %165 = vmatprep.subr.mxu0 0.0
    %166 = vmatpush1.msra.mxu0 %v41
    %167 = vmatprep.subr.mxu0 0.0
    %168 = vmatpush2.msra.mxu0 0.0
    %169 = vmatprep.subr.mxu0 0.0
    %170 = vmatpush2.msra.mxu0 0.0
    %171 = vmatprep.subr.mxu0 0.0
    %172 = vmatpush2.msra.mxu0 0.0
    %173 = vmatprep.subr.mxu0 0.0
    %174 = vmatpush2.msra.mxu0 0.0
    %175 = vmatprep.subr.mxu0 0.0
    %176 = vmatpush2.msra.mxu0 0.0
    %177 = vmatprep.subr.mxu0 0.0
    %178 = vmatpush2.msra.mxu0 0.0
    %179 = vmatprep.subr.mxu0 0.0
    %180 = vmatpush2.msra.mxu0 0.0
    %181 = vmatprep.subr.mxu0 0.0
    %182 = vmatpush2.msra.mxu0 0.0
    %183 = vmatprep.subr.mxu0 0.0
    %184 = vmatpush2.msra.mxu0 0.0
    %185 = vmatprep.subr.mxu0 0.0
    %186 = vmatpush2.msra.mxu0 0.0
    %187 = vmatprep.subr.mxu0 0.0
    %188 = vmatpush2.msra.mxu0 0.0
    %189 = vmatprep.subr.mxu0 0.0
    %190 = vmatpush2.msra.mxu0 0.0
    %191 = vmatprep.subr.mxu0 0.0
    %192 = vmatpush2.msra.mxu0 0.0
    %193 = vmatprep.subr.mxu0 0.0
    %194 = vmatpush2.msra.mxu0 0.0
    %195 = vmatprep.subr.mxu0 0.0
    %196 = vmatpush2.msra.mxu0 0.0
    %197 = vmatprep.subr.mxu0 0.0
    %198 = vmatpush2.msra.mxu0 0.0
    %199 = vmatprep.mubr.f32.mxu0 0.0
    %200 = vmatmul.mubr.f32.gmra.mxu0 %v130
    %v201 = vpop.f32.mrf.mxu0
    %v202 = vadd.f32 0.0, %v201
    %v203 = vpop.f32.mrf.mxu0
    %204 = vmatprep.mubr.f32.mxu0 0.0
    %205 = vmatmul.mubr.f32.gmra.mxu0 %v133
    %v206 = vpop.f32.mrf.mxu0
    %v207 = vadd.f32 0.0, %v206
    %v208 = vpop.f32.mrf.mxu0
    %209 = vdwg.mxu0
    %v210 = vld [vmem:[%s7] sm:$0xff]
    %v211 = vld [vmem:[%s7 + $0x8] sm:$0xff]
    %v212 = vld [vmem:[%s8] sm:$0xff]
    %v213 = vld [vmem:[%s8 + $0x8] sm:$0xff]
    %v214 = vld [vmem:[%s8 + $0x10] sm:$0xff]
    %v215 = vld [vmem:[%s8 + $0x18] sm:$0xff]
    %v216 = vld [vmem:[%s6] sm:$0xff]
    %v217 = vld [vmem:[%s6 + $0x8] sm:$0xff]
    %v218 = vld [vmem:[%s6 + $0x10] sm:$0xff]
    %v219 = vld [vmem:[%s6 + $0x18] sm:$0xff]
    %v220 = vld [vmem:[%s6 + $0x20] sm:$0xff]
    %v221 = vld [vmem:[%s6 + $0x28] sm:$0xff]
    %v222 = vld [vmem:[%s6 + $0x30] sm:$0xff]
    %v223 = vld [vmem:[%s6 + $0x38] sm:$0xff]
    %226 = vrot.lane.b32.xlu0 %v202, 8
    %v227 = vpop.permute.xlu0 %226
    %228 = vrot.lane.b32.xlu0 %v207, 8
    %v229 = vpop.permute.xlu0 %228
    %232 = vrot.lane.b32.xlu0 %v202, 16
    %v233 = vpop.permute.xlu0 %232
    %234 = vrot.lane.b32.xlu0 %v207, 16
    %v235 = vpop.permute.xlu0 %234
    %238 = vrot.lane.b32.xlu0 %v202, 24
    %v239 = vpop.permute.xlu0 %238
    %240 = vrot.lane.b32.xlu0 %v207, 24
    %v241 = vpop.permute.xlu0 %240
    %vm244 = vcmask 64512
    %v245 = vsel %vm244, %v202, %v227
    %v246 = vsel %vm244, %v207, %v229
    %v247 = vsel %vm45, %v245, %v233
    %v248 = vsel %vm45, %v246, %v235
    %vm249 = vcmask 195584
    %v250 = vsel %vm249, %v247, %v239
    %v251 = vsel %vm249, %v248, %v241
    %v252 = vmul.f32 %v250, %v210
    %v253 = vmul.f32 %v251, %v211
    %v255 = vsel %vm45, %v119, 0
    %257 = vmatprep.subr.mxu0 0.0
    %258 = vmatpush1.msra.mxu0 0.0
    %259 = vmatprep.subr.mxu0 0.0
    %260 = vmatpush1.msra.mxu0 0.0
    %261 = vmatprep.subr.mxu0 0.0
    %262 = vmatpush1.msra.mxu0 0.0
    %263 = vmatprep.subr.mxu0 0.0
    %264 = vmatpush1.msra.mxu0 0.0
    %265 = vmatprep.subr.mxu0 0.0
    %266 = vmatpush1.msra.mxu0 0.0
    %267 = vmatprep.subr.mxu0 0.0
    %268 = vmatpush1.msra.mxu0 0.0
    %269 = vmatprep.subr.mxu0 0.0
    %270 = vmatpush1.msra.mxu0 0.0
    %271 = vmatprep.subr.mxu0 0.0
    %272 = vmatpush1.msra.mxu0 0.0
    %273 = vmatprep.subr.mxu0 0.0
    %274 = vmatpush1.msra.mxu0 0.0
    %275 = vmatprep.subr.mxu0 0.0
    %276 = vmatpush1.msra.mxu0 0.0
    %277 = vmatprep.subr.mxu0 0.0
    %278 = vmatpush1.msra.mxu0 0.0
    %279 = vmatprep.subr.mxu0 0.0
    %280 = vmatpush1.msra.mxu0 0.0
    %281 = vmatprep.subr.mxu0 0.0
    %282 = vmatpush1.msra.mxu0 0.0
    %283 = vmatprep.subr.mxu0 0.0
    %284 = vmatpush1.msra.mxu0 0.0
    %285 = vmatprep.subr.mxu0 0.0
    %286 = vmatpush1.msra.mxu0 %v253
    %287 = vmatprep.subr.mxu0 0.0
    %288 = vmatpush1.msra.mxu0 %v252
    %289 = vmatprep.subr.mxu0 0.0
    %290 = vmatpush2.msra.mxu0 0.0
    %291 = vmatprep.subr.mxu0 0.0
    %292 = vmatpush2.msra.mxu0 0.0
    %293 = vmatprep.subr.mxu0 0.0
    %294 = vmatpush2.msra.mxu0 0.0
    %295 = vmatprep.subr.mxu0 0.0
    %296 = vmatpush2.msra.mxu0 0.0
    %297 = vmatprep.subr.mxu0 0.0
    %298 = vmatpush2.msra.mxu0 0.0
    %299 = vmatprep.subr.mxu0 0.0
    %300 = vmatpush2.msra.mxu0 0.0
    %301 = vmatprep.subr.mxu0 0.0
    %302 = vmatpush2.msra.mxu0 0.0
    %303 = vmatprep.subr.mxu0 0.0
    %304 = vmatpush2.msra.mxu0 0.0
    %305 = vmatprep.subr.mxu0 0.0
    %306 = vmatpush2.msra.mxu0 0.0
    %307 = vmatprep.subr.mxu0 0.0
    %308 = vmatpush2.msra.mxu0 0.0
    %309 = vmatprep.subr.mxu0 0.0
    %310 = vmatpush2.msra.mxu0 0.0
    %311 = vmatprep.subr.mxu0 0.0
    %312 = vmatpush2.msra.mxu0 0.0
    %313 = vmatprep.subr.mxu0 0.0
    %314 = vmatpush2.msra.mxu0 0.0
    %315 = vmatprep.subr.mxu0 0.0
    %316 = vmatpush2.msra.mxu0 0.0
    %317 = vmatprep.subr.mxu0 0.0
    %318 = vmatpush2.msra.mxu0 0.0
    %319 = vmatprep.subr.mxu0 0.0
    %320 = vmatpush2.msra.mxu0 0.0
    %321 = vmatprep.mubr.f32.mxu0 0.0
    %322 = vmatmul.mubr.f32.gmra.mxu0 %v255
    %v323 = vpop.f32.mrf.mxu0
    %v324 = vadd.f32 0.0, %v323
    %v325 = vpop.f32.mrf.mxu0
    %326 = vdwg.mxu0
    %327 = vrot.lane.b32.xlu0 %v39, 16
    %v328 = vpop.permute.xlu0 %327
    %330 = vrot.lane.b32.xlu0 %v39, 32
    %v331 = vpop.permute.xlu0 %330
    %333 = vrot.lane.b32.xlu0 %v39, 48
    %v334 = vpop.permute.xlu0 %333
    %v336 = vsel %vm45, %v39, %v328
    %vm337 = vcmask 261120
    %v338 = vsel %vm337, %v336, %v331
    %vm339 = vcmask 392192
    %v340 = vsel %vm339, %v338, %v334
    %v341 = vmul.f32 %v340, %v212
    %v342 = vmul.f32 %v340, %v213
    %v343 = vmul.f32 %v340, %v214
    %v344 = vmul.f32 %v340, %v215
    %vm345 = vcmask 523264
    %v347 = vsel %vm345, %v341, 0
    %v350 = vsel %vm345, %v342, 0
    %v353 = vsel %vm345, %v343, 0
    %v356 = vsel %vm345, %v344, 0
    %358 = vmatprep.subr.mxu0 0.0
    %359 = vmatpush1.msra.mxu0 0.0
    %360 = vmatprep.subr.mxu0 0.0
    %361 = vmatpush1.msra.mxu0 0.0
    %362 = vmatprep.subr.mxu0 0.0
    %363 = vmatpush1.msra.mxu0 0.0
    %364 = vmatprep.subr.mxu0 0.0
    %365 = vmatpush1.msra.mxu0 0.0
    %366 = vmatprep.subr.mxu0 0.0
    %367 = vmatpush1.msra.mxu0 0.0
    %368 = vmatprep.subr.mxu0 0.0
    %369 = vmatpush1.msra.mxu0 0.0
    %370 = vmatprep.subr.mxu0 0.0
    %371 = vmatpush1.msra.mxu0 0.0
    %372 = vmatprep.subr.mxu0 0.0
    %373 = vmatpush1.msra.mxu0 0.0
    %374 = vmatprep.subr.mxu0 0.0
    %375 = vmatpush1.msra.mxu0 %v223
    %376 = vmatprep.subr.mxu0 0.0
    %377 = vmatpush1.msra.mxu0 %v222
    %378 = vmatprep.subr.mxu0 0.0
    %379 = vmatpush1.msra.mxu0 %v221
    %380 = vmatprep.subr.mxu0 0.0
    %381 = vmatpush1.msra.mxu0 %v220
    %382 = vmatprep.subr.mxu0 0.0
    %383 = vmatpush1.msra.mxu0 %v219
    %384 = vmatprep.subr.mxu0 0.0
    %385 = vmatpush1.msra.mxu0 %v218
    %386 = vmatprep.subr.mxu0 0.0
    %387 = vmatpush1.msra.mxu0 %v217
    %388 = vmatprep.subr.mxu0 0.0
    %389 = vmatpush1.msra.mxu0 %v216
    %390 = vmatprep.subr.mxu0 0.0
    %391 = vmatpush2.msra.mxu0 0.0
    %392 = vmatprep.subr.mxu0 0.0
    %393 = vmatpush2.msra.mxu0 0.0
    %394 = vmatprep.subr.mxu0 0.0
    %395 = vmatpush2.msra.mxu0 0.0
    %396 = vmatprep.subr.mxu0 0.0
    %397 = vmatpush2.msra.mxu0 0.0
    %398 = vmatprep.subr.mxu0 0.0
    %399 = vmatpush2.msra.mxu0 0.0
    %400 = vmatprep.subr.mxu0 0.0
    %401 = vmatpush2.msra.mxu0 0.0
    %402 = vmatprep.subr.mxu0 0.0
    %403 = vmatpush2.msra.mxu0 0.0
    %404 = vmatprep.subr.mxu0 0.0
    %405 = vmatpush2.msra.mxu0 0.0
    %406 = vmatprep.subr.mxu0 0.0
    %407 = vmatpush2.msra.mxu0 0.0
    %408 = vmatprep.subr.mxu0 0.0
    %409 = vmatpush2.msra.mxu0 0.0
    %410 = vmatprep.subr.mxu0 0.0
    %411 = vmatpush2.msra.mxu0 0.0
    %412 = vmatprep.subr.mxu0 0.0
    %413 = vmatpush2.msra.mxu0 0.0
    %414 = vmatprep.subr.mxu0 0.0
    %415 = vmatpush2.msra.mxu0 0.0
    %416 = vmatprep.subr.mxu0 0.0
    %417 = vmatpush2.msra.mxu0 0.0
    %418 = vmatprep.subr.mxu0 0.0
    %419 = vmatpush2.msra.mxu0 0.0
    %420 = vmatprep.subr.mxu0 0.0
    %421 = vmatpush2.msra.mxu0 0.0
    %422 = vmatprep.mubr.f32.mxu0 0.0
    %423 = vmatmul.mubr.f32.gmra.mxu0 %v347
    %v424 = vpop.f32.mrf.mxu0
    %v425 = vadd.f32 0.0, %v424
    %v426 = vpop.f32.mrf.mxu0
    %427 = vmatprep.mubr.f32.mxu0 0.0
    %428 = vmatmul.mubr.f32.gmra.mxu0 %v350
    %v429 = vpop.f32.mrf.mxu0
    %v430 = vadd.f32 0.0, %v429
    %v431 = vpop.f32.mrf.mxu0
    %432 = vmatprep.mubr.f32.mxu0 0.0
    %433 = vmatmul.mubr.f32.gmra.mxu0 %v353
    %v434 = vpop.f32.mrf.mxu0
    %v435 = vadd.f32 0.0, %v434
    %v436 = vpop.f32.mrf.mxu0
    %437 = vmatprep.mubr.f32.mxu0 0.0
    %438 = vmatmul.mubr.f32.gmra.mxu0 %v356
    %v439 = vpop.f32.mrf.mxu0
    %v440 = vadd.f32 0.0, %v439
    %v441 = vpop.f32.mrf.mxu0
    %442 = vdwg.mxu0
    %443 = vrot.lane.b32.xlu0 %v202, 120
    %v444 = vpop.permute.xlu0 %443
    %445 = vrot.lane.b32.xlu0 %v207, 120
    %v446 = vpop.permute.xlu0 %445
    %v449 = vsel %vm244, %v444, %v202
    %v450 = vsel %vm244, %v446, %v207
    %v451 = vsel %vm45, %v449, %v227
    %v452 = vsel %vm45, %v450, %v229
    %v453 = vsel %vm249, %v451, %v233
    %v454 = vsel %vm249, %v452, %v235
    %v455 = vmul.f32 %v453, %v210
    %v456 = vmul.f32 %v454, %v211
    %v458 = vsel %vm45, %v124, 0
    %460 = vmatprep.subr.mxu0 0.0
    %461 = vmatpush1.msra.mxu0 0.0
    %462 = vmatprep.subr.mxu0 0.0
    %463 = vmatpush1.msra.mxu0 0.0
    %464 = vmatprep.subr.mxu0 0.0
    %465 = vmatpush1.msra.mxu0 0.0
    %466 = vmatprep.subr.mxu0 0.0
    %467 = vmatpush1.msra.mxu0 0.0
    %468 = vmatprep.subr.mxu0 0.0
    %469 = vmatpush1.msra.mxu0 0.0
    %470 = vmatprep.subr.mxu0 0.0
    %471 = vmatpush1.msra.mxu0 0.0
    %472 = vmatprep.subr.mxu0 0.0
    %473 = vmatpush1.msra.mxu0 0.0
    %474 = vmatprep.subr.mxu0 0.0
    %475 = vmatpush1.msra.mxu0 0.0
    %476 = vmatprep.subr.mxu0 0.0
    %477 = vmatpush1.msra.mxu0 0.0
    %478 = vmatprep.subr.mxu0 0.0
    %479 = vmatpush1.msra.mxu0 0.0
    %480 = vmatprep.subr.mxu0 0.0
    %481 = vmatpush1.msra.mxu0 0.0
    %482 = vmatprep.subr.mxu0 0.0
    %483 = vmatpush1.msra.mxu0 0.0
    %484 = vmatprep.subr.mxu0 0.0
    %485 = vmatpush1.msra.mxu0 0.0
    %486 = vmatprep.subr.mxu0 0.0
    %487 = vmatpush1.msra.mxu0 0.0
    %488 = vmatprep.subr.mxu0 0.0
    %489 = vmatpush1.msra.mxu0 %v456
    %490 = vmatprep.subr.mxu0 0.0
    %491 = vmatpush1.msra.mxu0 %v455
    %492 = vmatprep.subr.mxu0 0.0
    %493 = vmatpush2.msra.mxu0 0.0
    %494 = vmatprep.subr.mxu0 0.0
    %495 = vmatpush2.msra.mxu0 0.0
    %496 = vmatprep.subr.mxu0 0.0
    %497 = vmatpush2.msra.mxu0 0.0
    %498 = vmatprep.subr.mxu0 0.0
    %499 = vmatpush2.msra.mxu0 0.0
    %500 = vmatprep.subr.mxu0 0.0
    %501 = vmatpush2.msra.mxu0 0.0
    %502 = vmatprep.subr.mxu0 0.0
    %503 = vmatpush2.msra.mxu0 0.0
    %504 = vmatprep.subr.mxu0 0.0
    %505 = vmatpush2.msra.mxu0 0.0
    %506 = vmatprep.subr.mxu0 0.0
    %507 = vmatpush2.msra.mxu0 0.0
    %508 = vmatprep.subr.mxu0 0.0
    %509 = vmatpush2.msra.mxu0 0.0
    %510 = vmatprep.subr.mxu0 0.0
    %511 = vmatpush2.msra.mxu0 0.0
    %512 = vmatprep.subr.mxu0 0.0
    %513 = vmatpush2.msra.mxu0 0.0
    %514 = vmatprep.subr.mxu0 0.0
    %515 = vmatpush2.msra.mxu0 0.0
    %516 = vmatprep.subr.mxu0 0.0
    %517 = vmatpush2.msra.mxu0 0.0
    %518 = vmatprep.subr.mxu0 0.0
    %519 = vmatpush2.msra.mxu0 0.0
    %520 = vmatprep.subr.mxu0 0.0
    %521 = vmatpush2.msra.mxu0 0.0
    %522 = vmatprep.subr.mxu0 0.0
    %523 = vmatpush2.msra.mxu0 0.0
    %524 = vmatprep.mubr.f32.mxu0 0.0
    %525 = vmatmul.mubr.f32.gmra.mxu0 %v458
    %v526 = vpop.f32.mrf.mxu0
    %v527 = vadd.f32 0.0, %v526
    %v528 = vpop.f32.mrf.mxu0
    %529 = vdwg.mxu0
    %530 = vrot.lane.b32.xlu0 %v40, 16
    %v531 = vpop.permute.xlu0 %530
    %533 = vrot.lane.b32.xlu0 %v40, 32
    %v534 = vpop.permute.xlu0 %533
    %536 = vrot.lane.b32.xlu0 %v40, 48
    %v537 = vpop.permute.xlu0 %536
    %v539 = vsel %vm45, %v40, %v531
    %v540 = vsel %vm337, %v539, %v534
    %v541 = vsel %vm339, %v540, %v537
    %v542 = vmul.f32 %v541, %v212
    %v543 = vmul.f32 %v541, %v213
    %v544 = vmul.f32 %v541, %v214
    %v545 = vmul.f32 %v541, %v215
    %v547 = vsel %vm345, %v542, 0
    %v550 = vsel %vm345, %v543, 0
    %v553 = vsel %vm345, %v544, 0
    %v556 = vsel %vm345, %v545, 0
    %558 = vmatprep.subr.mxu0 0.0
    %559 = vmatpush1.msra.mxu0 0.0
    %560 = vmatprep.subr.mxu0 0.0
    %561 = vmatpush1.msra.mxu0 0.0
    %562 = vmatprep.subr.mxu0 0.0
    %563 = vmatpush1.msra.mxu0 0.0
    %564 = vmatprep.subr.mxu0 0.0
    %565 = vmatpush1.msra.mxu0 0.0
    %566 = vmatprep.subr.mxu0 0.0
    %567 = vmatpush1.msra.mxu0 0.0
    %568 = vmatprep.subr.mxu0 0.0
    %569 = vmatpush1.msra.mxu0 0.0
    %570 = vmatprep.subr.mxu0 0.0
    %571 = vmatpush1.msra.mxu0 0.0
    %572 = vmatprep.subr.mxu0 0.0
    %573 = vmatpush1.msra.mxu0 0.0
    %574 = vmatprep.subr.mxu0 0.0
    %575 = vmatpush1.msra.mxu0 %v223
    %576 = vmatprep.subr.mxu0 0.0
    %577 = vmatpush1.msra.mxu0 %v222
    %578 = vmatprep.subr.mxu0 0.0
    %579 = vmatpush1.msra.mxu0 %v221
    %580 = vmatprep.subr.mxu0 0.0
    %581 = vmatpush1.msra.mxu0 %v220
    %582 = vmatprep.subr.mxu0 0.0
    %583 = vmatpush1.msra.mxu0 %v219
    %584 = vmatprep.subr.mxu0 0.0
    %585 = vmatpush1.msra.mxu0 %v218
    %586 = vmatprep.subr.mxu0 0.0
    %587 = vmatpush1.msra.mxu0 %v217
    %588 = vmatprep.subr.mxu0 0.0
    %589 = vmatpush1.msra.mxu0 %v216
    %590 = vmatprep.subr.mxu0 0.0
    %591 = vmatpush2.msra.mxu0 0.0
    %592 = vmatprep.subr.mxu0 0.0
    %593 = vmatpush2.msra.mxu0 0.0
    %594 = vmatprep.subr.mxu0 0.0
    %595 = vmatpush2.msra.mxu0 0.0
    %596 = vmatprep.subr.mxu0 0.0
    %597 = vmatpush2.msra.mxu0 0.0
    %598 = vmatprep.subr.mxu0 0.0
    %599 = vmatpush2.msra.mxu0 0.0
    %600 = vmatprep.subr.mxu0 0.0
    %601 = vmatpush2.msra.mxu0 0.0
    %602 = vmatprep.subr.mxu0 0.0
    %603 = vmatpush2.msra.mxu0 0.0
    %604 = vmatprep.subr.mxu0 0.0
    %605 = vmatpush2.msra.mxu0 0.0
    %606 = vmatprep.subr.mxu0 0.0
    %607 = vmatpush2.msra.mxu0 0.0
    %608 = vmatprep.subr.mxu0 0.0
    %609 = vmatpush2.msra.mxu0 0.0
    %610 = vmatprep.subr.mxu0 0.0
    %611 = vmatpush2.msra.mxu0 0.0
    %612 = vmatprep.subr.mxu0 0.0
    %613 = vmatpush2.msra.mxu0 0.0
    %614 = vmatprep.subr.mxu0 0.0
    %615 = vmatpush2.msra.mxu0 0.0
    %616 = vmatprep.subr.mxu0 0.0
    %617 = vmatpush2.msra.mxu0 0.0
    %618 = vmatprep.subr.mxu0 0.0
    %619 = vmatpush2.msra.mxu0 0.0
    %620 = vmatprep.subr.mxu0 0.0
    %621 = vmatpush2.msra.mxu0 0.0
    %622 = vmatprep.mubr.f32.mxu0 0.0
    %623 = vmatmul.mubr.f32.gmra.mxu0 %v547
    %v624 = vpop.f32.mrf.mxu0
    %v625 = vadd.f32 0.0, %v624
    %v626 = vpop.f32.mrf.mxu0
    %627 = vmatprep.mubr.f32.mxu0 0.0
    %628 = vmatmul.mubr.f32.gmra.mxu0 %v550
    %v629 = vpop.f32.mrf.mxu0
    %v630 = vadd.f32 0.0, %v629
    %v631 = vpop.f32.mrf.mxu0
    %632 = vmatprep.mubr.f32.mxu0 0.0
    %633 = vmatmul.mubr.f32.gmra.mxu0 %v553
    %v634 = vpop.f32.mrf.mxu0
    %v635 = vadd.f32 0.0, %v634
    %v636 = vpop.f32.mrf.mxu0
    %637 = vmatprep.mubr.f32.mxu0 0.0
    %638 = vmatmul.mubr.f32.gmra.mxu0 %v556
    %v639 = vpop.f32.mrf.mxu0
    %v640 = vadd.f32 0.0, %v639
    %v641 = vpop.f32.mrf.mxu0
    %642 = vdwg.mxu0
    %v643 = vld [vmem:[%s2] sm:$0xff]
    %v644 = vld [vmem:[%s2 + $0x8] sm:$0xff]
    %v645 = vmul.f32 %v324, %v643
    %v646 = vmul.f32 %v527, %v644
    %v647 = vld [vmem:[%s3] sm:$0xff]
    %v648 = vld [vmem:[%s3 + $0x8] sm:$0xff]
    %v649 = vadd.f32 %v645, %v647
    %v650 = vadd.f32 %v646, %v648
    %v651 = vsel %vm337, %v649, -inf
    %652 = vmax.xlane.f32.xlu0 %v651
    %v653 = vpop.xlane.xlu0 %652
    %v654 = vsel %vm337, %v650, -inf
    %655 = vmax.xlane.f32.xlu0 %v654
    %v656 = vpop.xlane.xlu0 %655
    %v657 = vsub.f32 %v649, %v653
    %v658 = vsub.f32 %v650, %v656
    %v659 = vmul.f32 %v657, 1.442695
    %v660 = vpow.pop %v659
    %v661 = vmul.f32 %v658, 1.442695
    %v662 = vpow.pop %v661
    %v663 = vld [vmem:[%s9] sm:$0xff]
    %v664 = vld [vmem:[%s9 + $0x8] sm:$0xff]
    %v665 = vld [vmem:[%s9 + $0x10] sm:$0xff]
    %v666 = vld [vmem:[%s9 + $0x18] sm:$0xff]
    %v668 = vsel %vm337, %v660, 0
    %v671 = vsel %vm337, %v662, 0
    %673 = vmatprep.subr.mxu0 0.0
    %674 = vmatpush1.msra.mxu0 0.0
    %675 = vmatprep.subr.mxu0 0.0
    %676 = vmatpush1.msra.mxu0 0.0
    %677 = vmatprep.subr.mxu0 0.0
    %678 = vmatpush1.msra.mxu0 0.0
    %679 = vmatprep.subr.mxu0 0.0
    %680 = vmatpush1.msra.mxu0 0.0
    %681 = vmatprep.subr.mxu0 0.0
    %682 = vmatpush1.msra.mxu0 0.0
    %683 = vmatprep.subr.mxu0 0.0
    %684 = vmatpush1.msra.mxu0 0.0
    %685 = vmatprep.subr.mxu0 0.0
    %686 = vmatpush1.msra.mxu0 0.0
    %687 = vmatprep.subr.mxu0 0.0
    %688 = vmatpush1.msra.mxu0 0.0
    %689 = vmatprep.subr.mxu0 0.0
    %690 = vmatpush1.msra.mxu0 0.0
    %691 = vmatprep.subr.mxu0 0.0
    %692 = vmatpush1.msra.mxu0 0.0
    %693 = vmatprep.subr.mxu0 0.0
    %694 = vmatpush1.msra.mxu0 0.0
    %695 = vmatprep.subr.mxu0 0.0
    %696 = vmatpush1.msra.mxu0 0.0
    %697 = vmatprep.subr.mxu0 0.0
    %698 = vmatpush1.msra.mxu0 %v666
    %699 = vmatprep.subr.mxu0 0.0
    %700 = vmatpush1.msra.mxu0 %v665
    %701 = vmatprep.subr.mxu0 0.0
    %702 = vmatpush1.msra.mxu0 %v664
    %703 = vmatprep.subr.mxu0 0.0
    %704 = vmatpush1.msra.mxu0 %v663
    %705 = vmatprep.subr.mxu0 0.0
    %706 = vmatpush2.msra.mxu0 0.0
    %707 = vmatprep.subr.mxu0 0.0
    %708 = vmatpush2.msra.mxu0 0.0
    %709 = vmatprep.subr.mxu0 0.0
    %710 = vmatpush2.msra.mxu0 0.0
    %711 = vmatprep.subr.mxu0 0.0
    %712 = vmatpush2.msra.mxu0 0.0
    %713 = vmatprep.subr.mxu0 0.0
    %714 = vmatpush2.msra.mxu0 0.0
    %715 = vmatprep.subr.mxu0 0.0
    %716 = vmatpush2.msra.mxu0 0.0
    %717 = vmatprep.subr.mxu0 0.0
    %718 = vmatpush2.msra.mxu0 0.0
    %719 = vmatprep.subr.mxu0 0.0
    %720 = vmatpush2.msra.mxu0 0.0
    %721 = vmatprep.subr.mxu0 0.0
    %722 = vmatpush2.msra.mxu0 0.0
    %723 = vmatprep.subr.mxu0 0.0
    %724 = vmatpush2.msra.mxu0 0.0
    %725 = vmatprep.subr.mxu0 0.0
    %726 = vmatpush2.msra.mxu0 0.0
    %727 = vmatprep.subr.mxu0 0.0
    %728 = vmatpush2.msra.mxu0 0.0
    %729 = vmatprep.subr.mxu0 0.0
    %730 = vmatpush2.msra.mxu0 0.0
    %731 = vmatprep.subr.mxu0 0.0
    %732 = vmatpush2.msra.mxu0 0.0
    %733 = vmatprep.subr.mxu0 0.0
    %734 = vmatpush2.msra.mxu0 0.0
    %735 = vmatprep.subr.mxu0 0.0
    %736 = vmatpush2.msra.mxu0 0.0
    %737 = vmatprep.mubr.f32.mxu0 0.0
    %738 = vmatmul.mubr.f32.gmra.mxu0 %v668
    %v739 = vpop.f32.mrf.mxu0
    %v740 = vadd.f32 0.0, %v739
    %v741 = vpop.f32.mrf.mxu0
    %742 = vmatprep.mubr.f32.mxu0 0.0
    %743 = vmatmul.mubr.f32.gmra.mxu0 %v671
    %v744 = vpop.f32.mrf.mxu0
    %v745 = vadd.f32 0.0, %v744
    %v746 = vpop.f32.mrf.mxu0
    %747 = vdwg.mxu0
    %v748 = vrcp.pop %v740
    %v749 = vrcp.pop %v745
    %v750 = vmul.f32 %v740, %v748
    %v751 = vmul.f32 %v745, %v749
    %v752 = vsub.f32 2.0, %v750
    %v753 = vsub.f32 2.0, %v751
    %v754 = vmul.f32 %v748, %v752
    %v755 = vmul.f32 %v749, %v753
    %v756 = vmul.f32 %v660, %v754
    %v757 = vmul.f32 %v662, %v755
    %v758 = vld [vmem:[%s10] sm:$0x1]
    %v760 = vlaneseq
    %v761 = vshrl.u32 %v760, 7
    %v762 = vsub.s32 0, %v761
    %v763 = vrot.slane %v758, %v762
    %v766 = vsel %vm337, %v756, 0
    %768 = vmatprep.subr.mxu0 0.0
    %769 = vmatpush1.msra.mxu0 0.0
    %770 = vmatprep.subr.mxu0 0.0
    %771 = vmatpush1.msra.mxu0 0.0
    %772 = vmatprep.subr.mxu0 0.0
    %773 = vmatpush1.msra.mxu0 0.0
    %774 = vmatprep.subr.mxu0 0.0
    %775 = vmatpush1.msra.mxu0 0.0
    %776 = vmatprep.subr.mxu0 0.0
    %777 = vmatpush1.msra.mxu0 0.0
    %778 = vmatprep.subr.mxu0 0.0
    %779 = vmatpush1.msra.mxu0 0.0
    %780 = vmatprep.subr.mxu0 0.0
    %781 = vmatpush1.msra.mxu0 0.0
    %782 = vmatprep.subr.mxu0 0.0
    %783 = vmatpush1.msra.mxu0 0.0
    %784 = vmatprep.subr.mxu0 0.0
    %785 = vmatpush1.msra.mxu0 0.0
    %786 = vmatprep.subr.mxu0 0.0
    %787 = vmatpush1.msra.mxu0 0.0
    %788 = vmatprep.subr.mxu0 0.0
    %789 = vmatpush1.msra.mxu0 0.0
    %790 = vmatprep.subr.mxu0 0.0
    %791 = vmatpush1.msra.mxu0 0.0
    %792 = vmatprep.subr.mxu0 0.0
    %793 = vmatpush1.msra.mxu0 %v440
    %794 = vmatprep.subr.mxu0 0.0
    %795 = vmatpush1.msra.mxu0 %v435
    %796 = vmatprep.subr.mxu0 0.0
    %797 = vmatpush1.msra.mxu0 %v430
    %798 = vmatprep.subr.mxu0 0.0
    %799 = vmatpush1.msra.mxu0 %v425
    %800 = vmatprep.subr.mxu0 0.0
    %801 = vmatpush2.msra.mxu0 0.0
    %802 = vmatprep.subr.mxu0 0.0
    %803 = vmatpush2.msra.mxu0 0.0
    %804 = vmatprep.subr.mxu0 0.0
    %805 = vmatpush2.msra.mxu0 0.0
    %806 = vmatprep.subr.mxu0 0.0
    %807 = vmatpush2.msra.mxu0 0.0
    %808 = vmatprep.subr.mxu0 0.0
    %809 = vmatpush2.msra.mxu0 0.0
    %810 = vmatprep.subr.mxu0 0.0
    %811 = vmatpush2.msra.mxu0 0.0
    %812 = vmatprep.subr.mxu0 0.0
    %813 = vmatpush2.msra.mxu0 0.0
    %814 = vmatprep.subr.mxu0 0.0
    %815 = vmatpush2.msra.mxu0 0.0
    %816 = vmatprep.subr.mxu0 0.0
    %817 = vmatpush2.msra.mxu0 0.0
    %818 = vmatprep.subr.mxu0 0.0
    %819 = vmatpush2.msra.mxu0 0.0
    %820 = vmatprep.subr.mxu0 0.0
    %821 = vmatpush2.msra.mxu0 0.0
    %822 = vmatprep.subr.mxu0 0.0
    %823 = vmatpush2.msra.mxu0 0.0
    %824 = vmatprep.subr.mxu0 0.0
    %825 = vmatpush2.msra.mxu0 0.0
    %826 = vmatprep.subr.mxu0 0.0
    %827 = vmatpush2.msra.mxu0 0.0
    %828 = vmatprep.subr.mxu0 0.0
    %829 = vmatpush2.msra.mxu0 0.0
    %830 = vmatprep.subr.mxu0 0.0
    %831 = vmatpush2.msra.mxu0 0.0
    %832 = vmatprep.mubr.f32.mxu0 0.0
    %833 = vmatmul.mubr.f32.gmra.mxu0 %v766
    %v834 = vpop.f32.mrf.mxu0
    %v835 = vadd.f32 %v763, %v834
    %v836 = vpop.f32.mrf.mxu0
    %837 = vdwg.mxu0
    %838 = vst.msk [vmem:[#allocation2] sm:$0xff] %vm45, %v835
    %v840 = vsel %vm337, %v757, 0
    %842 = vmatprep.subr.mxu0 0.0
    %843 = vmatpush1.msra.mxu0 0.0
    %844 = vmatprep.subr.mxu0 0.0
    %845 = vmatpush1.msra.mxu0 0.0
    %846 = vmatprep.subr.mxu0 0.0
    %847 = vmatpush1.msra.mxu0 0.0
    %848 = vmatprep.subr.mxu0 0.0
    %849 = vmatpush1.msra.mxu0 0.0
    %850 = vmatprep.subr.mxu0 0.0
    %851 = vmatpush1.msra.mxu0 0.0
    %852 = vmatprep.subr.mxu0 0.0
    %853 = vmatpush1.msra.mxu0 0.0
    %854 = vmatprep.subr.mxu0 0.0
    %855 = vmatpush1.msra.mxu0 0.0
    %856 = vmatprep.subr.mxu0 0.0
    %857 = vmatpush1.msra.mxu0 0.0
    %858 = vmatprep.subr.mxu0 0.0
    %859 = vmatpush1.msra.mxu0 0.0
    %860 = vmatprep.subr.mxu0 0.0
    %861 = vmatpush1.msra.mxu0 0.0
    %862 = vmatprep.subr.mxu0 0.0
    %863 = vmatpush1.msra.mxu0 0.0
    %864 = vmatprep.subr.mxu0 0.0
    %865 = vmatpush1.msra.mxu0 0.0
    %866 = vmatprep.subr.mxu0 0.0
    %867 = vmatpush1.msra.mxu0 %v640
    %868 = vmatprep.subr.mxu0 0.0
    %869 = vmatpush1.msra.mxu0 %v635
    %870 = vmatprep.subr.mxu0 0.0
    %871 = vmatpush1.msra.mxu0 %v630
    %872 = vmatprep.subr.mxu0 0.0
    %873 = vmatpush1.msra.mxu0 %v625
    %874 = vmatprep.subr.mxu0 0.0
    %875 = vmatpush2.msra.mxu0 0.0
    %876 = vmatprep.subr.mxu0 0.0
    %877 = vmatpush2.msra.mxu0 0.0
    %878 = vmatprep.subr.mxu0 0.0
    %879 = vmatpush2.msra.mxu0 0.0
    %880 = vmatprep.subr.mxu0 0.0
    %881 = vmatpush2.msra.mxu0 0.0
    %882 = vmatprep.subr.mxu0 0.0
    %883 = vmatpush2.msra.mxu0 0.0
    %884 = vmatprep.subr.mxu0 0.0
    %885 = vmatpush2.msra.mxu0 0.0
    %886 = vmatprep.subr.mxu0 0.0
    %887 = vmatpush2.msra.mxu0 0.0
    %888 = vmatprep.subr.mxu0 0.0
    %889 = vmatpush2.msra.mxu0 0.0
    %890 = vmatprep.subr.mxu0 0.0
    %891 = vmatpush2.msra.mxu0 0.0
    %892 = vmatprep.subr.mxu0 0.0
    %893 = vmatpush2.msra.mxu0 0.0
    %894 = vmatprep.subr.mxu0 0.0
    %895 = vmatpush2.msra.mxu0 0.0
    %896 = vmatprep.subr.mxu0 0.0
    %897 = vmatpush2.msra.mxu0 0.0
    %898 = vmatprep.subr.mxu0 0.0
    %899 = vmatpush2.msra.mxu0 0.0
    %900 = vmatprep.subr.mxu0 0.0
    %901 = vmatpush2.msra.mxu0 0.0
    %902 = vmatprep.subr.mxu0 0.0
    %903 = vmatpush2.msra.mxu0 0.0
    %904 = vmatprep.subr.mxu0 0.0
    %905 = vmatpush2.msra.mxu0 0.0
    %906 = vmatprep.mubr.f32.mxu0 0.0
    %907 = vmatmul.mubr.f32.gmra.mxu0 %v840
    %v908 = vpop.f32.mrf.mxu0
    %v909 = vadd.f32 %v763, %v908
    %v910 = vpop.f32.mrf.mxu0
    %911 = vdwg.mxu0
    %912 = vst.msk [vmem:[#allocation2 + $0x8] sm:$0xff] %vm45, %v909
    // Predicated region
    $region46: #{multihead_attention.1} parent=1 // pred_check
      _
    $region47: #{multihead_attention.1} parent=1 // pred_check_branch
      %914 = sbr.rel (0) target = $region49
    $region48: #{multihead_attention.1} parent=1 // pred_region
      %s916 = ssub.s32 256, 256
      %917 = vsyncadd [#allocation3], %s916
      %s918 = sshll.u32 [#allocation2], 4
      %s919 = int_to_ptr.vmem [resolvable:$true] %s918
      %924 = dma.vmem_to_hbm [thread:$0]  %s919, 256, %s11, [#allocation3], 128, 128, 8
    $region49: #{multihead_attention.1} parent=1 // pred_fallthru
      _
    // Predicated region
    $region50: #{multihead_attention.1} parent=1 // pred_check
      _
    $region51: #{multihead_attention.1} parent=1 // pred_check_branch
      %926 = sbr.rel (0) target = $region53
    $region52: #{multihead_attention.1} parent=1 // pred_region
      %927 = dma.done [#allocation3], 256
    $region53: #{multihead_attention.1} parent=1 // pred_fallthru
      _
    %928 = vsyncpa [#allocation3], 1

</llo_original>
